<compile_context>
chip_gen: v5e
topology: v5e:2x2
jax: 0.10.0
libtpu: 0.0.40
codegen_flags: <defaults>
</compile_context>

<pallas_src>
import jax
import jax.numpy as jnp
from jax.experimental import pallas as pl
from jax.experimental.pallas import tpu as pltpu


def _round_up(x, m):
    return (x + m - 1) // m * m


def _cdiv(a, b):
    return -(-a // b)


def _vmem_capacity_bytes():
    try:
        return int(pltpu.get_tpu_info().vmem_capacity_bytes)
    except Exception:
        return 64 << 20  # conservative (v7x-sized) fallback


def _pad2(a, rows, cols):
    """Zero-pad a 2-D array up to (rows, cols); no-op (no copy) when aligned."""
    pr, pc = rows - a.shape[0], cols - a.shape[1]
    if pr == 0 and pc == 0:
        return a
    return jnp.pad(a, ((0, pr), (0, pc)))


# ----------------------------------------------------------------------------
# Kernels
# ----------------------------------------------------------------------------
def ffn_resident_kernel(x_ref, w1_ref, b1_ref, w2_ref, b2_ref, o_ref):
    # Full W1/W2 are VMEM-resident (constant index_map -> fetched from HBM once).
    # x_ref: (tm, dmp)   w1_ref: (dmp, dfp)   b1_ref: (1, dfp)
    # w2_ref: (dfp, dmp) b2_ref: (1, dmp)     o_ref: (tm, dmp)
    h = jnp.dot(x_ref[...], w1_ref[...], preferred_element_type=jnp.float32)
    h = jnp.maximum(h + b1_ref[...], 0.0)          # bias + ReLU in f32
    # dropout (eval mode) == identity
    out = jnp.dot(h.astype(w2_ref.dtype), w2_ref[...],
                  preferred_element_type=jnp.float32)
    o_ref[...] = (out + b2_ref[...]).astype(o_ref.dtype)


def ffn_streamed_kernel(x_ref, w1_ref, b1_ref, w2_ref, b2_ref, o_ref, acc_ref):
    # d_ff is the trailing reduction axis; W1 column tiles / W2 row tiles are
    # streamed, second GEMM accumulates into an f32 VMEM scratch.
    f = pl.program_id(1)

    @pl.when(f == 0)
    def _():
        acc_ref[...] = jnp.zeros_like(acc_ref)

    h = jnp.dot(x_ref[...], w1_ref[...], preferred_element_type=jnp.float32)
    h = jnp.maximum(h + b1_ref[...], 0.0)
    # dropout (eval mode) == identity
    acc_ref[...] += jnp.dot(h.astype(w2_ref.dtype), w2_ref[...],
                            preferred_element_type=jnp.float32)

    @pl.when(f == pl.num_programs(1) - 1)
    def _():
        o_ref[...] = (acc_ref[...] + b2_ref[...]).astype(o_ref.dtype)


# ----------------------------------------------------------------------------
# Wrapper
# ----------------------------------------------------------------------------
def feed_forward(x, w1, b1, w2, b2, *, tm=None, tf=None, compute_dtype=None):
    """x: [B, S, d_model]; w1: [d_model, d_ff]; w2: [d_ff, d_model].

    Weights are stored [in_features, out_features] (transposed vs torch.nn.Linear).
    compute_dtype (e.g. jnp.bfloat16) optionally casts x/W1/W2 for faster MXU
    matmuls; accumulation stays f32 and the output keeps x's original dtype.
    """
    B, S, d_model = x.shape
    d_ff = w1.shape[1]
    M = B * S
    out_dtype = x.dtype

    if compute_dtype is not None:
        x = x.astype(compute_dtype)
        w1 = w1.astype(compute_dtype)
        w2 = w2.astype(compute_dtype)

    xb = jnp.dtype(x.dtype).itemsize
    w1b = jnp.dtype(w1.dtype).itemsize
    w2b = jnp.dtype(w2.dtype).itemsize
    ob = jnp.dtype(out_dtype).itemsize

    vmem_cap = _vmem_capacity_bytes()
    budget = int(vmem_cap * 0.85)            # generation-aware VMEM cap
    small_vmem = vmem_cap < (100 << 20)      # v7x-class: 64 MiB VMEM, 2 TensorCores

    dmp = _round_up(d_model, 128)            # lane-dense padded d_model
    dfp_full = _round_up(d_ff, 128)

    # ---- row tile: generation-aware default ----
    if tm is None:
        # v5e/v6e need ~650 flop/B when streaming weights -> big row tiles;
        # v7x needs only ~310 flop/B and has half the VMEM.
        tm = 512 if small_vmem else 1024
    tm_eff = _round_up(min(tm, _round_up(M, 8)), 8)

    # On the 2-TensorCore generation, make the "parallel" row grid an even
    # count >= 2 so both cores get work.
    if small_vmem:
        n_tiles = _cdiv(M, tm_eff)
        if n_tiles == 1 and M > 256:
            tm_eff = _round_up(_cdiv(M, 2), 8)
        elif n_tiles > 1 and n_tiles % 2 == 1:
            tm_eff = _round_up(_cdiv(M, n_tiles + 1), 8)

    # ---- VMEM footprint models (include the materialized f32 h tile) ----
    def resident_bytes(tm_, dfp_):
        return (2 * tm_ * dmp * xb + 2 * tm_ * dmp * ob          # x / out tiles
                + 2 * dmp * dfp_ * w1b + 2 * dfp_ * w1b          # W1 + b1 (dbl-buf)
                + 2 * dfp_ * dmp * w2b + 2 * dmp * w2b           # W2 + b2 (dbl-buf)
                + tm_ * dfp_ * (4 + w2b)                         # h f32 + downcast
                + tm_ * dmp * 4)                                 # f32 result pre-cast

    def streamed_bytes(tm_, tf_):
        return (2 * tm_ * dmp * xb + 2 * tm_ * dmp * ob
                + 2 * dmp * tf_ * w1b + 2 * tf_ * w1b
                + 2 * tf_ * dmp * w2b + 2 * dmp * w2b
                + tm_ * tf_ * (4 + w2b)                          # h f32 + downcast
                + tm_ * dmp * 4)                                 # f32 acc scratch

    # ---- prefer VMEM-resident weights (fetched once; no per-row-tile re-DMA) ----
    resident = False
    tf_eff = None
    if tf is None:
        tm_res = tm_eff
        for _ in range(4):
            if resident_bytes(tm_res, dfp_full) <= budget:
                resident = True
                break
            if tm_res <= 256:
                break
            tm_res = max(256, _round_up(tm_res // 2, 8))
        if resident:
            tm_eff = tm_res

    if resident:
        dfp = dfp_full
    else:
        # ---- streamed fallback: divisor-aware tf choice, then fit loop ----
        tf_target = min(_round_up(tf if tf is not None else 512, 128), dfp_full)
        if d_ff % 128 == 0:
            cand = tf_target
            while cand >= 128:
                if d_ff % cand == 0:
                    tf_eff = cand
                    break
                cand -= 128
        if tf_eff is None:
            tf_eff = tf_target
        # shrink tf first (preserves arithmetic intensity), then tm, until it fits
        while streamed_bytes(tm_eff, tf_eff) > budget:
            if tf_eff > 256:
                tf_eff = _round_up(tf_eff // 2, 128)
            elif tm_eff > 8:
                tm_eff = max(8, _round_up(tm_eff // 2, 8))
            else:
                break
        dfp = _round_up(d_ff, tf_eff)

    Mp = _round_up(M, tm_eff)

    # ---- zero-pad operands (exact for this FFN; no-op when already aligned) ----
    x2 = _pad2(x.reshape(M, d_model), Mp, dmp)
    w1p = _pad2(w1, dmp, dfp)
    b1p = _pad2(b1.reshape(1, d_ff), 1, dfp)
    w2p = _pad2(w2, dfp, dmp)
    b2p = _pad2(b2.reshape(1, d_model), 1, dmp)

    # ---- cost estimate + compiler params ----
    flops = 4 * M * d_model * d_ff
    if resident:
        vmem_needed = resident_bytes(tm_eff, dfp)
        bytes_accessed = (M * d_model * (xb + ob)
                          + d_model * d_ff * (w1b + w2b)
                          + d_ff * w1b + d_model * w2b)
        grid = (Mp // tm_eff,)
        dim_sem = ("parallel",)
    else:
        vmem_needed = streamed_bytes(tm_eff, tf_eff)
        n_row = Mp // tm_eff
        bytes_accessed = (M * d_model * (xb + ob)
                          + n_row * (d_model * d_ff * (w1b + w2b)
                                     + d_ff * w1b + d_model * w2b))
        grid = (Mp // tm_eff, dfp // tf_eff)
        dim_sem = ("parallel", "arbitrary")

    cp_kwargs = dict(
        dimension_semantics=dim_sem,
        # Always >= 32 MiB (never below any chip's default scoped limit, fixes
        # the v5e 16 MiB default), capped at 85% of physical VMEM.
        vmem_limit_bytes=int(min(max(vmem_needed * 5 // 4, 32 << 20), budget)),
    )

    if resident:
        kernel = ffn_resident_kernel
        in_specs = [
            pl.BlockSpec((tm_eff, dmp), lambda i: (i, 0)),   # x row tile
            pl.BlockSpec((dmp, dfp), lambda i: (0, 0)),      # W1 (resident)
            pl.BlockSpec((1, dfp), lambda i: (0, 0)),        # b1 (resident)
            pl.BlockSpec((dfp, dmp), lambda i: (0, 0)),      # W2 (resident)
            pl.BlockSpec((1, dmp), lambda i: (0, 0)),        # b2 (resident)
        ]
        out_spec = pl.BlockSpec((tm_eff, dmp), lambda i: (i, 0))
        scratch = []
    else:
        kernel = ffn_streamed_kernel
        in_specs = [
            pl.BlockSpec((tm_eff, dmp), lambda i, f: (i, 0)),  # x row tile
            pl.BlockSpec((dmp, tf_eff), lambda i, f: (0, f)),  # W1 column tile
            pl.BlockSpec((1, tf_eff), lambda i, f: (0, f)),    # b1 slice
            pl.BlockSpec((tf_eff, dmp), lambda i, f: (f, 0)),  # W2 row tile
            pl.BlockSpec((1, dmp), lambda i, f: (0, 0)),       # b2
        ]
        out_spec = pl.BlockSpec((tm_eff, dmp), lambda i, f: (i, 0))
        scratch = [pltpu.VMEM((tm_eff, dmp), jnp.float32)]

    out = pl.pallas_call(
        kernel,
        out_shape=jax.ShapeDtypeStruct((Mp, dmp), out_dtype),
        grid_spec=pltpu.PrefetchScalarGridSpec(
            num_scalar_prefetch=0,
            grid=grid,
            in_specs=in_specs,
            out_specs=out_spec,
            scratch_shapes=scratch,
        ),
        compiler_params=pltpu.CompilerParams(**cp_kwargs),
        cost_estimate=pl.CostEstimate(flops=flops, transcendentals=0,
                                      bytes_accessed=int(bytes_accessed)),
    )(x2, w1p, b1p, w2p, b2p)

    return out[:M, :d_model].reshape(B, S, d_model)


def init_params(key, d_model, d_ff, dtype=jnp.float32):
    """Deterministic init mimicking torch.nn.Linear (uniform +-1/sqrt(fan_in))."""
    k1, k2, k3, k4 = jax.random.split(key, 4)
    lim1 = 1.0 / (d_model ** 0.5)
    lim2 = 1.0 / (d_ff ** 0.5)
    w1 = jax.random.uniform(k1, (d_model, d_ff), dtype, -lim1, lim1)
    b1 = jax.random.uniform(k2, (d_ff,), dtype, -lim1, lim1)
    w2 = jax.random.uniform(k3, (d_ff, d_model), dtype, -lim2, lim2)
    b2 = jax.random.uniform(k4, (d_model,), dtype, -lim2, lim2)
    return w1, b1, w2, b2


if __name__ == "__main__":
    d_model, d_ff = 32, 64
    B, S = 2, 8

    key = jax.random.PRNGKey(0)
    kx, kp = jax.random.split(key)
    x = jax.random.normal(kx, (B, S, d_model), jnp.float32)
    w1, b1, w2, b2 = init_params(kp, d_model, d_ff)

    out = feed_forward(x, w1, b1, w2, b2)
    out = jax.block_until_ready(out)

    # reference check in plain JAX
    ref = jnp.maximum(x @ w1 + b1, 0.0) @ w2 + b2
    assert out.shape == (B, S, d_model)
    assert jnp.allclose(out, ref, atol=1e-5, rtol=1e-5)

    print("KERNEL_OK")
</pallas_src>

<mosaic_0001>
module attributes {stable_mosaic.version = 11 : i64} {
  func.func @ffn_resident_kernel(%arg0: i32, %arg1: memref<16x128xf32, #tpu.memory_space<vmem>>, %arg2: memref<128x128xf32, #tpu.memory_space<vmem>>, %arg3: memref<1x128xf32, #tpu.memory_space<vmem>>, %arg4: memref<128x128xf32, #tpu.memory_space<vmem>>, %arg5: memref<1x128xf32, #tpu.memory_space<vmem>>, %arg6: memref<16x128xf32, #tpu.memory_space<vmem>>) attributes {dimension_semantics = [#tpu.dimension_semantics<parallel>], iteration_bounds = array<i64: 1>, scalar_prefetch = 0 : i64, scratch_operands = 0 : i64, tpu.core_type = #tpu.core_type<tc>, window_params = [{transform_indices = @transform_0, window_bounds = array<i64: 16, 128>}, {pipeline_mode = #tpu.pipeline_mode<synchronous>, transform_indices = @transform_1, window_bounds = array<i64: 128, 128>}, {pipeline_mode = #tpu.pipeline_mode<synchronous>, transform_indices = @transform_2, window_bounds = array<i64: 1, 128>}, {pipeline_mode = #tpu.pipeline_mode<synchronous>, transform_indices = @transform_3, window_bounds = array<i64: 128, 128>}, {pipeline_mode = #tpu.pipeline_mode<synchronous>, transform_indices = @transform_4, window_bounds = array<i64: 1, 128>}, {transform_indices = @transform_5, window_bounds = array<i64: 16, 128>}]} {
    %c0 = arith.constant 0 : index
    %c0_0 = arith.constant 0 : index
    %0 = vector.load %arg1[%c0, %c0_0] : memref<16x128xf32, #tpu.memory_space<vmem>>, vector<16x128xf32>
    %c0_1 = arith.constant 0 : index
    %c0_2 = arith.constant 0 : index
    %1 = vector.load %arg2[%c0_1, %c0_2] : memref<128x128xf32, #tpu.memory_space<vmem>>, vector<128x128xf32>
    %cst = arith.constant dense<0.000000e+00> : vector<16x128xf32>
    %2 = tpu.matmul %0, %1, %cst {dimension_numbers = #tpu.dot_dimension_numbers<[1], [0], [0], [1], [0, 0, 1, 1], [], []>} : vector<16x128xf32>, vector<128x128xf32>, vector<16x128xf32> -> vector<16x128xf32>
    %c0_3 = arith.constant 0 : index
    %c0_4 = arith.constant 0 : index
    %3 = vector.load %arg3[%c0_3, %c0_4] : memref<1x128xf32, #tpu.memory_space<vmem>>, vector<1x128xf32>
    %4 = vector.broadcast %3 : vector<1x128xf32> to vector<16x128xf32>
    %5 = arith.addf %2, %4 : vector<16x128xf32>
    %cst_5 = arith.constant 0.000000e+00 : f32
    %6 = vector.broadcast %cst_5 : f32 to vector<16x128xf32>
    %7 = arith.maximumf %5, %6 : vector<16x128xf32>
    %c0_6 = arith.constant 0 : index
    %c0_7 = arith.constant 0 : index
    %8 = vector.load %arg4[%c0_6, %c0_7] : memref<128x128xf32, #tpu.memory_space<vmem>>, vector<128x128xf32>
    %cst_8 = arith.constant dense<0.000000e+00> : vector<16x128xf32>
    %9 = tpu.matmul %7, %8, %cst_8 {dimension_numbers = #tpu.dot_dimension_numbers<[1], [0], [0], [1], [0, 0, 1, 1], [], []>} : vector<16x128xf32>, vector<128x128xf32>, vector<16x128xf32> -> vector<16x128xf32>
    %c0_9 = arith.constant 0 : index
    %c0_10 = arith.constant 0 : index
    %10 = vector.load %arg5[%c0_9, %c0_10] : memref<1x128xf32, #tpu.memory_space<vmem>>, vector<1x128xf32>
    %11 = vector.broadcast %10 : vector<1x128xf32> to vector<16x128xf32>
    %12 = arith.addf %9, %11 : vector<16x128xf32>
    %c0_11 = arith.constant 0 : index
    %c0_12 = arith.constant 0 : index
    %13 = vector.load %arg6[%c0_11, %c0_12] : memref<16x128xf32, #tpu.memory_space<vmem>>, vector<16x128xf32>
    tpu.vector_store %arg6[%c0_11, %c0_12], %12 {strides = array<i32>} : memref<16x128xf32, #tpu.memory_space<vmem>>, vector<16x128xf32>,
    return
  }
  func.func @transform_0(%arg0: i32) -> (i32, i32) {
    %c0_i32 = arith.constant 0 : i32
    %c0_i32_0 = arith.constant 0 : i32
    return %arg0, %c0_i32 : i32, i32
  }
  func.func @transform_1(%arg0: i32) -> (i32, i32) {
    %c0_i32 = arith.constant 0 : i32
    %c0_i32_0 = arith.constant 0 : i32
    %c0_i32_1 = arith.constant 0 : i32
    return %c0_i32, %c0_i32_0 : i32, i32
  }
  func.func @transform_2(%arg0: i32) -> (i32, i32) {
    %c0_i32 = arith.constant 0 : i32
    %c0_i32_0 = arith.constant 0 : i32
    %c0_i32_1 = arith.constant 0 : i32
    return %c0_i32, %c0_i32_0 : i32, i32
  }
  func.func @transform_3(%arg0: i32) -> (i32, i32) {
    %c0_i32 = arith.constant 0 : i32
    %c0_i32_0 = arith.constant 0 : i32
    %c0_i32_1 = arith.constant 0 : i32
    return %c0_i32, %c0_i32_0 : i32, i32
  }
  func.func @transform_4(%arg0: i32) -> (i32, i32) {
    %c0_i32 = arith.constant 0 : i32
    %c0_i32_0 = arith.constant 0 : i32
    %c0_i32_1 = arith.constant 0 : i32
    return %c0_i32, %c0_i32_0 : i32, i32
  }
  func.func @transform_5(%arg0: i32) -> (i32, i32) {
    %c0_i32 = arith.constant 0 : i32
    %c0_i32_0 = arith.constant 0 : i32
    return %arg0, %c0_i32 : i32, i32
  }
}

</mosaic_0001>

<llo_original>
// kernel: tpu_custom_call.1
$region0: #{tpu_custom_call.1}
  #allocation0 [shape = 'u32[]', space=smem, size = 0x4, offset = 0x4, fixed_abs, tag = 'smem constant byte address 0x4 - core index']
  #allocation1 [shape = 'u32[72,128]{1,0:T(1,128)}', space=vmem, size = 0x9000, scoped, tag = 'internal scratch']
  %s0 = inlined_call_operand.hbm [shape: f32[16,128], index: 0, kind: input, shape index: {}]
  %s1 = inlined_call_operand.hbm [shape: f32[128,128], index: 1, kind: input, shape index: {}]
  %s2 = inlined_call_operand.vmem [shape: f32[1,128], index: 2, kind: input, shape index: {}]
  %s3 = inlined_call_operand.hbm [shape: f32[128,128], index: 3, kind: input, shape index: {}]
  %s4 = inlined_call_operand.vmem [shape: f32[1,128], index: 4, kind: input, shape index: {}]
  %s5 = inlined_call_operand.hbm [shape: f32[16,128], index: 5, kind: output, shape index: {}]
  %s6 = sld [smem:[#allocation0]]
  $region42: #{tpu_custom_call.1} parent=0
    _
  %s8 = ssub.s32 1, %s6
  %s9 = scalar_select 0, %s8, %s6
  $region1: #{tpu_custom_call.1} parent=0
    #allocation2 [shape = 'u8[8192]{0}', space=vmem, size = 0x2000, scoped, tag = 'input window, operand 0, single buffered']
    #allocation3 [shape = 's32[1]{0}', space=sflag, size = 0x4, scoped, tag = 'scoped memory for tpu_custom_call.1']
    #allocation4 [shape = 's32[1]{0}', space=sflag, size = 0x4, scoped, tag = 'scoped memory for tpu_custom_call.1']
    #allocation5 [shape = 'u8[65536]{0}', space=vmem, size = 0x10000, scoped, tag = 'input window, operand 1, single buffered']
    #allocation6 [shape = 's32[1]{0}', space=sflag, size = 0x4, scoped, tag = 'scoped memory for tpu_custom_call.1']
    #allocation7 [shape = 'u8[65536]{0}', space=vmem, size = 0x10000, scoped, tag = 'input window, operand 3, single buffered']
    #allocation8 [shape = 'u8[8192]{0}', space=vmem, size = 0x2000, scoped, tag = 'output window, operand 0, single buffered']
    %10 = vsyncpa [#allocation3], 0
    %11 = vsyncpa [#allocation6], 0
    %12 = vsyncpa [#allocation4], 0
    // Predicated region
    $region2: #{tpu_custom_call.1} parent=1 // pred_check
      _
    $region3: #{tpu_custom_call.1} parent=1 // pred_check_branch
      %14 = sbr.rel (0) target = $region5
    $region4: #{tpu_custom_call.1} parent=1 // pred_region
      %16 = vsyncadd [#allocation3], 0
      %s17 = sshll.u32 %s0, 4
      %s18 = int_to_ptr.hbm [resolvable:$true] %s17
      %s19 = sshll.u32 [#allocation2], 4
      %s20 = int_to_ptr.vmem [resolvable:$true] %s19
      %25 = dma.hbm_to_vmem [thread:$0]  %s18, 256, %s20, [#allocation3], 128, 128, 8
    $region5: #{tpu_custom_call.1} parent=1 // pred_fallthru
      _
    // Predicated region
    $region6: #{tpu_custom_call.1} parent=1 // pred_check
      _
    $region7: #{tpu_custom_call.1} parent=1 // pred_check_branch
      %27 = sbr.rel (0) target = $region9
    $region8: #{tpu_custom_call.1} parent=1 // pred_region
      %29 = vsyncadd [#allocation6], 0
      %s30 = sshll.u32 %s1, 4
      %s31 = int_to_ptr.hbm [resolvable:$true] %s30
      %s32 = sshll.u32 [#allocation5], 4
      %s33 = int_to_ptr.vmem [resolvable:$true] %s32
      %38 = dma.hbm_to_vmem [thread:$0]  %s31, 2048, %s33, [#allocation6], 128, 128, 8
    $region9: #{tpu_custom_call.1} parent=1 // pred_fallthru
      _
    // Predicated region
    $region10: #{tpu_custom_call.1} parent=1 // pred_check
      _
    $region11: #{tpu_custom_call.1} parent=1 // pred_check_branch
      %40 = sbr.rel (0) target = $region13
    $region12: #{tpu_custom_call.1} parent=1 // pred_region
      _
    $region13: #{tpu_custom_call.1} parent=1 // pred_fallthru
      _
    // Predicated region
    $region14: #{tpu_custom_call.1} parent=1 // pred_check
      _
    $region15: #{tpu_custom_call.1} parent=1 // pred_check_branch
      %42 = sbr.rel (0) target = $region17
    $region16: #{tpu_custom_call.1} parent=1 // pred_region
      %44 = vsyncadd [#allocation6], 0
      %s45 = sshll.u32 %s3, 4
      %s46 = int_to_ptr.hbm [resolvable:$true] %s45
      %s47 = sshll.u32 [#allocation7], 4
      %s48 = int_to_ptr.vmem [resolvable:$true] %s47
      %53 = dma.hbm_to_vmem [thread:$0]  %s46, 2048, %s48, [#allocation6], 128, 128, 8
    $region17: #{tpu_custom_call.1} parent=1 // pred_fallthru
      _
    // Predicated region
    $region18: #{tpu_custom_call.1} parent=1 // pred_check
      _
    $region19: #{tpu_custom_call.1} parent=1 // pred_check_branch
      %55 = sbr.rel (0) target = $region21
    $region20: #{tpu_custom_call.1} parent=1 // pred_region
      _
    $region21: #{tpu_custom_call.1} parent=1 // pred_fallthru
      _
    // Predicated region
    $region22: #{tpu_custom_call.1} parent=1 // pred_check
      _
    $region23: #{tpu_custom_call.1} parent=1 // pred_check_branch
      %57 = sbr.rel (0) target = $region25
    $region24: #{tpu_custom_call.1} parent=1 // pred_region
      %59 = dma.done [#allocation3], 256
    $region25: #{tpu_custom_call.1} parent=1 // pred_fallthru
      _
    // Predicated region
    $region26: #{tpu_custom_call.1} parent=1 // pred_check
      _
    $region27: #{tpu_custom_call.1} parent=1 // pred_check_branch
      %61 = sbr.rel (0) target = $region29
    $region28: #{tpu_custom_call.1} parent=1 // pred_region
      %63 = dma.done [#allocation6], 2048
    $region29: #{tpu_custom_call.1} parent=1 // pred_fallthru
      _
    // Predicated region
    $region30: #{tpu_custom_call.1} parent=1 // pred_check
      _
    $region31: #{tpu_custom_call.1} parent=1 // pred_check_branch
      %65 = sbr.rel (0) target = $region33
    $region32: #{tpu_custom_call.1} parent=1 // pred_region
      %67 = dma.done [#allocation6], 2048
    $region33: #{tpu_custom_call.1} parent=1 // pred_fallthru
      _
    %v68 = vld [vmem:[#allocation2] sm:$0xff]
    %v69 = vld [vmem:[#allocation2 + $0x8] sm:$0xff]
    %v70 = vld [vmem:[#allocation5] sm:$0xff]
    %v71 = vld [vmem:[#allocation5 + $0x8] sm:$0xff]
    %v72 = vld [vmem:[#allocation5 + $0x10] sm:$0xff]
    %v73 = vld [vmem:[#allocation5 + $0x18] sm:$0xff]
    %v74 = vld [vmem:[#allocation5 + $0x20] sm:$0xff]
    %v75 = vld [vmem:[#allocation5 + $0x28] sm:$0xff]
    %v76 = vld [vmem:[#allocation5 + $0x30] sm:$0xff]
    %v77 = vld [vmem:[#allocation5 + $0x38] sm:$0xff]
    %v78 = vld [vmem:[#allocation5 + $0x40] sm:$0xff]
    %v79 = vld [vmem:[#allocation5 + $0x48] sm:$0xff]
    %v80 = vld [vmem:[#allocation5 + $0x50] sm:$0xff]
    %v81 = vld [vmem:[#allocation5 + $0x58] sm:$0xff]
    %v82 = vld [vmem:[#allocation5 + $0x60] sm:$0xff]
    %v83 = vld [vmem:[#allocation5 + $0x68] sm:$0xff]
    %v84 = vld [vmem:[#allocation5 + $0x70] sm:$0xff]
    %v85 = vld [vmem:[#allocation5 + $0x78] sm:$0xff]
    %v86 = vld [vmem:[%s2] sm:$0x1]
    %v88 = vperm.slane %v86, 0
    %90 = vmatpush.msra.mxu0 %v85
    %91 = vmatpush.msra.mxu0 %v84
    %92 = vmatpush.msra.mxu0 %v83
    %93 = vmatpush.msra.mxu0 %v82
    %94 = vmatpush.msra.mxu0 %v81
    %95 = vmatpush.msra.mxu0 %v80
    %96 = vmatpush.msra.mxu0 %v79
    %97 = vmatpush.msra.mxu0 %v78
    %98 = vmatpush.msra.mxu0 %v77
    %99 = vmatpush.msra.mxu0 %v76
    %100 = vmatpush.msra.mxu0 %v75
    %101 = vmatpush.msra.mxu0 %v74
    %102 = vmatpush.msra.mxu0 %v73
    %103 = vmatpush.msra.mxu0 %v72
    %104 = vmatpush.msra.mxu0 %v71
    %105 = vmatpush.msra.mxu0 %v70
    %106 = vmatmul.f32.gmra.mxu0 %v68
    %v107 = vpop.f32.mrf.mxu0
    %v108 = vadd.f32 %v88, %v107
    %109 = vmatmul.f32.gmra.mxu0 %v69
    %v110 = vpop.f32.mrf.mxu0
    %v111 = vadd.f32 %v88, %v110
    %112 = vdwg.mxu0
    %v113 = vmax.f32 %v108, 0.0
    %v114 = vmax.f32 %v111, 0.0
    %v115 = vld [vmem:[#allocation7] sm:$0xff]
    %v116 = vld [vmem:[#allocation7 + $0x8] sm:$0xff]
    %v117 = vld [vmem:[#allocation7 + $0x10] sm:$0xff]
    %v118 = vld [vmem:[#allocation7 + $0x18] sm:$0xff]
    %v119 = vld [vmem:[#allocation7 + $0x20] sm:$0xff]
    %v120 = vld [vmem:[#allocation7 + $0x28] sm:$0xff]
    %v121 = vld [vmem:[#allocation7 + $0x30] sm:$0xff]
    %v122 = vld [vmem:[#allocation7 + $0x38] sm:$0xff]
    %v123 = vld [vmem:[#allocation7 + $0x40] sm:$0xff]
    %v124 = vld [vmem:[#allocation7 + $0x48] sm:$0xff]
    %v125 = vld [vmem:[#allocation7 + $0x50] sm:$0xff]
    %v126 = vld [vmem:[#allocation7 + $0x58] sm:$0xff]
    %v127 = vld [vmem:[#allocation7 + $0x60] sm:$0xff]
    %v128 = vld [vmem:[#allocation7 + $0x68] sm:$0xff]
    %v129 = vld [vmem:[#allocation7 + $0x70] sm:$0xff]
    %v130 = vld [vmem:[#allocation7 + $0x78] sm:$0xff]
    %v131 = vld [vmem:[%s4] sm:$0x1]
    %v133 = vperm.slane %v131, 0
    %135 = vmatpush.msra.mxu0 %v130
    %136 = vmatpush.msra.mxu0 %v129
    %137 = vmatpush.msra.mxu0 %v128
    %138 = vmatpush.msra.mxu0 %v127
    %139 = vmatpush.msra.mxu0 %v126
    %140 = vmatpush.msra.mxu0 %v125
    %141 = vmatpush.msra.mxu0 %v124
    %142 = vmatpush.msra.mxu0 %v123
    %143 = vmatpush.msra.mxu0 %v122
    %144 = vmatpush.msra.mxu0 %v121
    %145 = vmatpush.msra.mxu0 %v120
    %146 = vmatpush.msra.mxu0 %v119
    %147 = vmatpush.msra.mxu0 %v118
    %148 = vmatpush.msra.mxu0 %v117
    %149 = vmatpush.msra.mxu0 %v116
    %150 = vmatpush.msra.mxu0 %v115
    %151 = vmatmul.f32.gmra.mxu0 %v113
    %v152 = vpop.f32.mrf.mxu0
    %v153 = vadd.f32 %v133, %v152
    %154 = vmatmul.f32.gmra.mxu0 %v114
    %v155 = vpop.f32.mrf.mxu0
    %v156 = vadd.f32 %v133, %v155
    %157 = vdwg.mxu0
    %158 = vst [vmem:[#allocation8] sm:$0xff] %v153
    %159 = vst [vmem:[#allocation8 + $0x8] sm:$0xff] %v156
    // Predicated region
    $region34: #{tpu_custom_call.1} parent=1 // pred_check
      _
    $region35: #{tpu_custom_call.1} parent=1 // pred_check_branch
      %161 = sbr.rel (0) target = $region37
    $region36: #{tpu_custom_call.1} parent=1 // pred_region
      %163 = vsyncadd [#allocation4], 0
      %s164 = sshll.u32 [#allocation8], 4
      %s165 = int_to_ptr.vmem [resolvable:$true] %s164
      %s166 = sshll.u32 %s5, 4
      %s167 = int_to_ptr.hbm [resolvable:$true] %s166
      %172 = dma.vmem_to_hbm [thread:$0]  %s165, 256, %s167, [#allocation4], 128, 128, 8
    $region37: #{tpu_custom_call.1} parent=1 // pred_fallthru
      _
    // Predicated region
    $region38: #{tpu_custom_call.1} parent=1 // pred_check
      _
    $region39: #{tpu_custom_call.1} parent=1 // pred_check_branch
      %174 = sbr.rel (0) target = $region41
    $region40: #{tpu_custom_call.1} parent=1 // pred_region
      %176 = dma.done [#allocation4], 256
    $region41: #{tpu_custom_call.1} parent=1 // pred_fallthru
      _
    %177 = vsyncpa [#allocation3], 1
    %178 = vsyncpa [#allocation6], 1
    %179 = vsyncpa [#allocation4], 1

</llo_original>
